<compile_context>
chip_gen: v7x
topology: tpu7x:2x2x1
jax: 0.10.0
libtpu: 0.0.40
codegen_flags: <defaults>
</compile_context>

<pallas_src>
from functools import partial

import jax
import jax.numpy as jnp
from jax.experimental import pallas as pl
from jax.experimental.pallas import tpu as pltpu


def _round_up(x: int, m: int) -> int:
    return ((x + m - 1) // m) * m


# ------------------------------ Pallas kernel ------------------------------
def patch_embed_kernel(p_ref, w_ref, add_ref, o_ref, *, ts, n_s_tiles):
    # p_ref:   (ts, P_pad)     bf16  one M tile of the collapsed (B*S_pad) rows
    #                                 (row 0 of each image's block = zero CLS slot)
    # w_ref:   (P_pad, E_pad)  bf16  pre-transposed conv weight, VMEM-resident
    # add_ref: (S_pad, E_pad)  f32   cls/bias + positional term, VMEM-resident
    # o_ref:   (ts, E_pad)     f32 or bf16
    if n_s_tiles == 1:
        add = add_ref[...]
    else:
        # Which sequence-tile of the (batch-invariant) additive term this
        # M tile corresponds to (ts divides S_pad by construction).
        s_tile = pl.program_id(0) % n_s_tiles
        add = add_ref[pl.ds(pl.multiple_of(s_tile * ts, ts), ts), :]
    acc = jnp.dot(p_ref[...], w_ref[...], preferred_element_type=jnp.float32)
    o_ref[...] = (acc + add).astype(o_ref.dtype)


def _patch_embed_pallas(patches2d, w_t, add_term, *, ts, out_dtype):
    M_pad, P_pad = patches2d.shape
    E_pad = w_t.shape[1]
    S_pad = add_term.shape[0]
    n_s_tiles = S_pad // ts
    grid = (M_pad // ts,)

    out_itemsize = jnp.dtype(out_dtype).itemsize
    # VMEM: double-buffered streaming tiles (patches, output) + the resident
    # weight / add blocks (counted with 2 buffers to stay conservative).
    vmem_needed = (2 * ts * P_pad * 2                  # patch tiles   (bf16)
                   + 2 * ts * E_pad * out_itemsize     # output tiles
                   + 2 * P_pad * E_pad * 2             # resident weight (bf16)
                   + 2 * S_pad * E_pad * 4)            # resident add    (f32)
    # Cap well below v7x's 64 MiB physical VMEM per TensorCore.
    vmem_limit = int(min(48 << 20, max(4 << 20, 2 * vmem_needed)))

    return pl.pallas_call(
        partial(patch_embed_kernel, ts=ts, n_s_tiles=n_s_tiles),
        out_shape=jax.ShapeDtypeStruct((M_pad, E_pad), out_dtype),
        grid=grid,
        in_specs=[
            pl.BlockSpec((ts, P_pad), lambda m: (m, 0)),      # streamed per tile
            pl.BlockSpec((P_pad, E_pad), lambda m: (0, 0)),   # resident (1 HBM read)
            pl.BlockSpec((S_pad, E_pad), lambda m: (0, 0)),   # resident (1 HBM read)
        ],
        out_specs=pl.BlockSpec((ts, E_pad), lambda m: (m, 0)),
        compiler_params=pltpu.CompilerParams(
            dimension_semantics=("parallel",),  # v7x: 2 TCs split the M tiles
            vmem_limit_bytes=vmem_limit,
        ),
    )(patches2d, w_t, add_term)


# ------------------------------ JAX wrapper ------------------------------
def _im2col(x, ps):
    # Non-overlapping patches: Conv2d(kernel=stride=ps) as a matmul.
    B, C, H, W = x.shape
    x = x.reshape(B, C, H // ps, ps, W // ps, ps)
    x = x.transpose(0, 2, 4, 1, 3, 5)              # (B, H/ps, W/ps, C, ps, ps)
    return x.reshape(B, (H // ps) * (W // ps), C * ps * ps)


@partial(jax.jit, static_argnames=("patch_size", "out_dtype"))
def patch_embedding_forward(x, params, *, patch_size, out_dtype=jnp.float32):
    """Matches PatchEmbedding.forward (dropout = identity at inference)."""
    proj_w = params["proj_w"]        # (E, C, ps, ps)  nn.Conv2d layout
    proj_b = params["proj_b"]        # (E,)
    cls_token = params["cls_token"]  # (1, 1, E)
    pos_embed = params["pos_embed"]  # (1, N+1, E)

    B, C, H, W = x.shape
    E = proj_w.shape[0]
    ps = patch_size
    N = (H // ps) * (W // ps)
    P = C * ps * ps
    N1 = N + 1

    # im2col + pad + bf16 cast are fused by XLA ahead of the kernel.
    # NOTE: the padded bf16 patch tensor is still materialized in HBM before
    # the pallas_call reads it (one extra write+read of the patch bytes).
    # TODO(synk): express the non-overlapping patch gather in the input
    # BlockSpec so only `x` is ever read from HBM.
    patches = _im2col(x, ps)                                          # (B, N, P)
    # Row 0 (CLS slot) is all-zero: its output comes entirely from add_term.
    patches_ext = jnp.concatenate(
        [jnp.zeros((B, 1, P), patches.dtype), patches], axis=1)       # (B, N+1, P)

    # Wrapper-side weight transpose -> (P, E): direct (M,K)x(K,N) MXU feed.
    w_t = proj_w.reshape(E, P).T                                      # (P, E)

    # Fused additive term: row 0 = cls + pos[0]; rows 1.. = conv bias + pos[i].
    # Batch-invariant -> read once, kept VMEM-resident by the kernel.
    add_term = jnp.concatenate(
        [cls_token[0] + pos_embed[0, :1],
         proj_b[None, :] + pos_embed[0, 1:]], axis=0)                 # (N+1, E)

    # TPU-friendly padding: lane dims (P, E) -> multiples of 128; the per-image
    # sequence to one M tile (<=256 rows) or a whole number of 256-row tiles.
    E_pad = _round_up(E, 128)
    P_pad = _round_up(P, 128)
    if N1 <= 256:
        S_pad = _round_up(N1, 16)
        ts = S_pad                    # one M tile per image
    else:
        ts = 256                      # full-height MXU pushes on v6e/v7x
        S_pad = _round_up(N1, ts)

    # Deliberate inference-precision choice: bf16 matmul operands, f32 accum.
    patches_ext = jnp.pad(
        patches_ext, ((0, 0), (0, S_pad - N1), (0, P_pad - P))
    ).astype(jnp.bfloat16)
    # Collapse batch into the M axis -> 1-D grid of (B*S_pad)//ts tiles.
    patches2d = patches_ext.reshape(B * S_pad, P_pad)
    w_t = jnp.pad(w_t, ((0, P_pad - P), (0, E_pad - E))).astype(jnp.bfloat16)
    add_term = jnp.pad(
        add_term, ((0, S_pad - N1), (0, E_pad - E))).astype(jnp.float32)

    out = _patch_embed_pallas(patches2d, w_t, add_term, ts=ts, out_dtype=out_dtype)
    out = out.reshape(B, S_pad, E_pad)
    return out[:, :N1, :E]                                            # (B, N+1, E)


# ---------------------------------- demo ----------------------------------
if __name__ == "__main__":
    B, C, img_size, patch_size, embed_dim = 2, 4, 16, 4, 32
    num_patches = (img_size // patch_size) ** 2

    key = jax.random.PRNGKey(0)
    kx, kw, kb, kc, kp = jax.random.split(key, 5)
    x = jax.random.normal(kx, (B, C, img_size, img_size), jnp.float32)
    params = {
        "proj_w": 0.02 * jax.random.normal(
            kw, (embed_dim, C, patch_size, patch_size), jnp.float32),
        "proj_b": 0.02 * jax.random.normal(kb, (embed_dim,), jnp.float32),
        "cls_token": 0.02 * jax.random.normal(kc, (1, 1, embed_dim), jnp.float32),
        "pos_embed": 0.02 * jax.random.normal(
            kp, (1, num_patches + 1, embed_dim), jnp.float32),
    }

    out = patch_embedding_forward(x, params, patch_size=patch_size)
    jax.block_until_ready(out)

    # Pure-JAX f32 reference (conv-as-matmul + cls + pos) for correctness.
    patches = _im2col(x, patch_size)
    w2d = params["proj_w"].reshape(embed_dim, -1)
    emb = patches @ w2d.T + params["proj_b"]
    ref = jnp.concatenate(
        [jnp.broadcast_to(params["cls_token"], (B, 1, embed_dim)), emb], axis=1
    ) + params["pos_embed"]

    assert out.shape == (B, num_patches + 1, embed_dim), out.shape
    assert bool(jnp.all(jnp.isfinite(out)))
    max_err = float(jnp.max(jnp.abs(out - ref)))
    assert bool(jnp.allclose(out, ref, atol=3e-2, rtol=3e-2)), max_err
    print("KERNEL_OK")
</pallas_src>

<mosaic_0001>
module attributes {stable_mosaic.version = 11 : i64} {
  func.func @patch_embed_kernel(%arg0: i32, %arg1: memref<32x128xbf16, #tpu.memory_space<vmem>>, %arg2: memref<128x128xbf16, #tpu.memory_space<vmem>>, %arg3: memref<32x128xf32, #tpu.memory_space<vmem>>, %arg4: memref<32x128xf32, #tpu.memory_space<vmem>>) attributes {dimension_semantics = [#tpu.dimension_semantics<parallel>], iteration_bounds = array<i64: 2>, scalar_prefetch = 0 : i64, scratch_operands = 0 : i64, tpu.core_type = #tpu.core_type<tc>, window_params = [{transform_indices = @transform_0, window_bounds = array<i64: 32, 128>}, {pipeline_mode = #tpu.pipeline_mode<synchronous>, transform_indices = @transform_1, window_bounds = array<i64: 128, 128>}, {pipeline_mode = #tpu.pipeline_mode<synchronous>, transform_indices = @transform_2, window_bounds = array<i64: 32, 128>}, {transform_indices = @transform_3, window_bounds = array<i64: 32, 128>}]} {
    %c0 = arith.constant 0 : index
    %c0_0 = arith.constant 0 : index
    %0 = vector.load %arg3[%c0, %c0_0] : memref<32x128xf32, #tpu.memory_space<vmem>>, vector<32x128xf32>
    %c0_1 = arith.constant 0 : index
    %c0_2 = arith.constant 0 : index
    %1 = vector.load %arg1[%c0_1, %c0_2] : memref<32x128xbf16, #tpu.memory_space<vmem>>, vector<32x128xbf16>
    %c0_3 = arith.constant 0 : index
    %c0_4 = arith.constant 0 : index
    %2 = vector.load %arg2[%c0_3, %c0_4] : memref<128x128xbf16, #tpu.memory_space<vmem>>, vector<128x128xbf16>
    %cst = arith.constant dense<0.000000e+00> : vector<32x128xf32>
    %3 = tpu.matmul %1, %2, %cst {dimension_numbers = #tpu.dot_dimension_numbers<[1], [0], [0], [1], [0, 0, 1, 1], [], []>} : vector<32x128xbf16>, vector<128x128xbf16>, vector<32x128xf32> -> vector<32x128xf32>
    %4 = arith.addf %3, %0 : vector<32x128xf32>
    %c0_5 = arith.constant 0 : index
    %c0_6 = arith.constant 0 : index
    %5 = vector.load %arg4[%c0_5, %c0_6] : memref<32x128xf32, #tpu.memory_space<vmem>>, vector<32x128xf32>
    tpu.vector_store %arg4[%c0_5, %c0_6], %4 {strides = array<i32>} : memref<32x128xf32, #tpu.memory_space<vmem>>, vector<32x128xf32>,
    return
  }
  func.func @transform_0(%arg0: i32) -> (i32, i32) {
    %c0_i32 = arith.constant 0 : i32
    %c0_i32_0 = arith.constant 0 : i32
    return %arg0, %c0_i32 : i32, i32
  }
  func.func @transform_1(%arg0: i32) -> (i32, i32) {
    %c0_i32 = arith.constant 0 : i32
    %c0_i32_0 = arith.constant 0 : i32
    %c0_i32_1 = arith.constant 0 : i32
    return %c0_i32, %c0_i32_0 : i32, i32
  }
  func.func @transform_2(%arg0: i32) -> (i32, i32) {
    %c0_i32 = arith.constant 0 : i32
    %c0_i32_0 = arith.constant 0 : i32
    %c0_i32_1 = arith.constant 0 : i32
    return %c0_i32, %c0_i32_0 : i32, i32
  }
  func.func @transform_3(%arg0: i32) -> (i32, i32) {
    %c0_i32 = arith.constant 0 : i32
    %c0_i32_0 = arith.constant 0 : i32
    return %arg0, %c0_i32 : i32, i32
  }
}

</mosaic_0001>

<llo_original>
// kernel: patch_embedding_forward.1
$region0: #{patch_embedding_forward.1}
  #allocation0 [shape = 'u32[]', space=smem, size = 0x4, offset = 0x4, fixed_abs, tag = 'smem constant byte address 0x4 - core index']
  #allocation1 [shape = 'u32[144,128]{1,0:T(1,128)}', space=vmem, size = 0x12000, scoped, tag = 'internal scratch']
  %s0 = inlined_call_operand.vmem [shape: bf16[64,128], index: 0, kind: input, shape index: {}]
  %s1 = inlined_call_operand.vmem [shape: bf16[128,128], index: 1, kind: input, shape index: {}]
  %s2 = inlined_call_operand.vmem [shape: f32[32,128], index: 2, kind: input, shape index: {}]
  %s3 = inlined_call_operand.vmem [shape: f32[64,128], index: 3, kind: output, shape index: {}]
  %s4 = sld [smem:[#allocation0]]
  $region45: #{patch_embedding_forward.1} parent=0
    _
  %s6 = ssub.s32 1, %s4
  %s7 = scalar_select 0, %s6, %s4
  loop: start=0, step=1, limit=4
  $region2: #{patch_embedding_forward.1} parent=0 // loop_pre_header
    _
  $region3: #{patch_embedding_forward.1} parent=0 // loop_header
    %s9 = sphi 0, %s13
    %p10 = scmp.ge.s32.totalorder %s9, 4
    %s19 = sphi 0, %s21
    %s22 = sphi 0, %s19
    %s23 = sphi 0, %s22
    %s39 = sphi 0, %s23
    %s43 = sphi 0, %s43
    %s45 = sphi 0, %s43
    %s46 = sphi 0, %s45
    %s60 = sphi 0, %s46
    %s64 = sphi 0, %s64
    %s66 = sphi 0, %s64
    %s67 = sphi 0, %s66
    %s81 = sphi 0, %s67
    %s87 = sphi 0, %s89
    %s90 = sphi 0, %s87
    %s91 = sphi 0, %s90
    %s107 = sphi 0, %s91
  $region4: #{patch_embedding_forward.1} parent=0 // loop_header_branch
    %12 = sbr.rel (%p10) target = $region8
  $region5: #{patch_embedding_forward.1} parent=0 // loop_body
    %s14 = ssub.s32 %s9, 1
    %s15 = ssub.s32 %s9, 2
    %s16 = sadd.s32 %s9, 1
    %s17 = ssub.s32 %s9, %s16
    %p18 = scmp.eq.s32.totalorder %s17, 0
    %s20 = sadd.s32 %s19, 1
    %s21 = scalar_select %p18, %s19, %s20
    %p24 = pneg %p18
    %p25 = scmp.eq.s32.totalorder %s9, 1
    %p26 = por %p24, %p25
    %p27 = scmp.ne.s32.totalorder %s19, %s22
    %p28 = scmp.eq.s32.totalorder %s9, 0
    %p29 = por %p27, %p28
    %p30 = scmp.ne.s32.totalorder %s19, %s22
    %p31 = scmp.eq.s32.totalorder %s14, 1
    %p32 = por %p30, %p31
    %p33 = scmp.ne.s32.totalorder %s22, %s23
    %p34 = scmp.eq.s32.totalorder %s14, 0
    %p35 = por %p33, %p34
    %p36 = scmp.ne.s32.totalorder %s22, %s23
    %p37 = scmp.eq.s32.totalorder %s15, 1
    %p38 = por %p36, %p37
    %p40 = scmp.ne.s32.totalorder %s23, %s39
    %p41 = scmp.eq.s32.totalorder %s15, 0
    %p42 = por %p40, %p41
    %s44 = sadd.s32 %s43, 1
    %p47 = scmp.eq.s32.totalorder %s9, 1
    %p48 = scmp.ne.s32.totalorder %s43, %s45
    %p49 = scmp.eq.s32.totalorder %s9, 0
    %p50 = por %p48, %p49
    %p51 = scmp.ne.s32.totalorder %s43, %s45
    %p52 = scmp.eq.s32.totalorder %s14, 1
    %p53 = por %p51, %p52
    %p54 = scmp.ne.s32.totalorder %s45, %s46
    %p55 = scmp.eq.s32.totalorder %s14, 0
    %p56 = por %p54, %p55
    %p57 = scmp.ne.s32.totalorder %s45, %s46
    %p58 = scmp.eq.s32.totalorder %s15, 1
    %p59 = por %p57, %p58
    %p61 = scmp.ne.s32.totalorder %s46, %s60
    %p62 = scmp.eq.s32.totalorder %s15, 0
    %p63 = por %p61, %p62
    %s65 = sadd.s32 %s64, 1
    %p68 = scmp.eq.s32.totalorder %s9, 1
    %p69 = scmp.ne.s32.totalorder %s64, %s66
    %p70 = scmp.eq.s32.totalorder %s9, 0
    %p71 = por %p69, %p70
    %p72 = scmp.ne.s32.totalorder %s64, %s66
    %p73 = scmp.eq.s32.totalorder %s14, 1
    %p74 = por %p72, %p73
    %p75 = scmp.ne.s32.totalorder %s66, %s67
    %p76 = scmp.eq.s32.totalorder %s14, 0
    %p77 = por %p75, %p76
    %p78 = scmp.ne.s32.totalorder %s66, %s67
    %p79 = scmp.eq.s32.totalorder %s15, 1
    %p80 = por %p78, %p79
    %p82 = scmp.ne.s32.totalorder %s67, %s81
    %p83 = scmp.eq.s32.totalorder %s15, 0
    %p84 = por %p82, %p83
    %s85 = ssub.s32 %s9, %s16
    %p86 = scmp.eq.s32.totalorder %s85, 0
    %s88 = sadd.s32 %s87, 1
    %s89 = scalar_select %p86, %s87, %s88
    %p92 = pneg %p86
    %p93 = scmp.eq.s32.totalorder %s9, 1
    %p94 = por %p92, %p93
    %p95 = scmp.ne.s32.totalorder %s87, %s90
    %p96 = scmp.eq.s32.totalorder %s9, 0
    %p97 = por %p95, %p96
    %p98 = scmp.ne.s32.totalorder %s87, %s90
    %p99 = scmp.eq.s32.totalorder %s14, 1
    %p100 = por %p98, %p99
    %p101 = scmp.ne.s32.totalorder %s90, %s91
    %p102 = scmp.eq.s32.totalorder %s14, 0
    %p103 = por %p101, %p102
    %p104 = scmp.ne.s32.totalorder %s90, %s91
    %p105 = scmp.eq.s32.totalorder %s15, 1
    %p106 = por %p104, %p105
    %p108 = scmp.ne.s32.totalorder %s91, %s107
    %p109 = scmp.eq.s32.totalorder %s15, 0
    %p110 = por %p108, %p109
    %p111 = scmp.le.s32.totalorder 1, %s9
    %p112 = scmp.lt.s32.totalorder %s9, 3
    %p113 = pnand %p111, %p112
    %p114 = pneg %p113
    // Predicated region
    $region9: #{patch_embedding_forward.1} parent=5 // pred_check
      _
    $region10: #{patch_embedding_forward.1} parent=5 // pred_check_branch
      %116 = sbr.rel (%p113) target = $region12
    $region11: #{patch_embedding_forward.1} parent=5 // pred_region
      %s117 = ssub.s32 %s9, 1
      // Predicated region
      $region13: #{patch_embedding_forward.1} parent=11 // pred_check
        %p118 = pneg %p56
      $region14: #{patch_embedding_forward.1} parent=11 // pred_check_branch
        %120 = sbr.rel (%p118) target = $region16
      $region15: #{patch_embedding_forward.1} parent=11 // pred_region
        _
      $region16: #{patch_embedding_forward.1} parent=11 // pred_fallthru
        _
      // Predicated region
      $region17: #{patch_embedding_forward.1} parent=11 // pred_check
        %p121 = pneg %p77
      $region18: #{patch_embedding_forward.1} parent=11 // pred_check_branch
        %123 = sbr.rel (%p121) target = $region20
      $region19: #{patch_embedding_forward.1} parent=11 // pred_region
        _
      $region20: #{patch_embedding_forward.1} parent=11 // pred_fallthru
        _
    $region12: #{patch_embedding_forward.1} parent=5 // pred_fallthru
      _
    %p124 = scmp.lt.s32.totalorder %s9, 2
    // Predicated region
    $region21: #{patch_embedding_forward.1} parent=5 // pred_check
      %p125 = pneg %p124
    $region22: #{patch_embedding_forward.1} parent=5 // pred_check_branch
      %127 = sbr.rel (%p125) target = $region24
    $region23: #{patch_embedding_forward.1} parent=5 // pred_region
      // Predicated region
      $region25: #{patch_embedding_forward.1} parent=23 // pred_check
        %p128 = pneg %p29
      $region26: #{patch_embedding_forward.1} parent=23 // pred_check_branch
        %130 = sbr.rel (%p128) target = $region28
      $region27: #{patch_embedding_forward.1} parent=23 // pred_region
        %s131 = smul.u32 4, %s9
        %p132 = scmp.lt.s32.totalorder %s131, 7
        %s133 = scalar_select %p132, %s131, 7
        %s134 = smul.addr %s133, 4
        %s135 = scalar_lea.vmem %s0, %s134
        %s136 = smul.u32 4, %s9
      $region28: #{patch_embedding_forward.1} parent=23 // pred_fallthru
        _
    $region24: #{patch_embedding_forward.1} parent=5 // pred_fallthru
      _
    %p137 = scmp.le.s32.totalorder 1, %s9
    %p138 = scmp.lt.s32.totalorder %s9, 3
    %p139 = pnand %p137, %p138
    %p140 = pneg %p139
    // Predicated region
    $region29: #{patch_embedding_forward.1} parent=5 // pred_check
      _
    $region30: #{patch_embedding_forward.1} parent=5 // pred_check_branch
      %142 = sbr.rel (%p139) target = $region32
    $region31: #{patch_embedding_forward.1} parent=5 // pred_region
      %s143 = ssub.s32 %s9, 1
      %s144 = smul.u32 4, %s14
      %p145 = scmp.lt.s32.totalorder %s144, 7
      %s146 = scalar_select %p145, %s144, 7
      %s147 = smul.addr %s146, 4
      %s148 = scalar_lea.vmem %s0, %s147
      %p149 = pneg %p35
      %p150 = pneg %p32
      %p151 = pneg %p56
      %p152 = pneg %p53
      %p153 = pneg %p77
      %p154 = pneg %p74
      %p155 = pneg %p103
      %p156 = pneg %p100
      %s157 = smul.u32 4, %s14
      %p158 = scmp.lt.s32.totalorder %s157, 7
      %s159 = scalar_select %p158, %s157, 7
      %s160 = smul.addr %s159, 8
      %s161 = scalar_lea.vmem %s3, %s160
      %s162 = smul.u32 4, %s14
      %p163 = scmp.lt.s32.totalorder %s162, 7
      %s164 = scalar_select %p163, %s162, 7
      %s165 = smul.addr %s164, 4
      %s166 = scalar_lea.vmem %s0, %s165
      %s167 = smul.u32 4, %s14
      %s168 = smul.u32 4, %s14
      %p169 = scmp.lt.s32.totalorder %s168, 7
      %s170 = scalar_select %p169, %s168, 7
      %s171 = smul.addr %s170, 8
      %s172 = scalar_lea.vmem %s3, %s171
      %s173 = smul.u32 4, %s14
      %v175 = vld [vmem:[%s2] sm:$0xff]
      %v176 = vld [vmem:[%s2 + $0x8] sm:$0xff]
      %v177 = vld [vmem:[%s2 + $0x10] sm:$0xff]
      %v178 = vld [vmem:[%s2 + $0x18] sm:$0xff]
      %v179 = vld [vmem:[%s166] sm:$0xf]
      %v180 = vld [vmem:[%s166 + $0x4] sm:$0xf]
      %v181 = vld [vmem:[%s166 + $0x8] sm:$0xf]
      %v182 = vld [vmem:[%s166 + $0xc] sm:$0xf]
      %v183 = vld [vmem:[%s1] sm:$0xf]
      %v184 = vld [vmem:[%s1 + $0x4] sm:$0xf]
      %v185 = vld [vmem:[%s1 + $0x8] sm:$0xf]
      %v186 = vld [vmem:[%s1 + $0xc] sm:$0xf]
      %v187 = vld [vmem:[%s1 + $0x10] sm:$0xf]
      %v188 = vld [vmem:[%s1 + $0x14] sm:$0xf]
      %v189 = vld [vmem:[%s1 + $0x18] sm:$0xf]
      %v190 = vld [vmem:[%s1 + $0x1c] sm:$0xf]
      %v191 = vld [vmem:[%s1 + $0x20] sm:$0xf]
      %v192 = vld [vmem:[%s1 + $0x24] sm:$0xf]
      %v193 = vld [vmem:[%s1 + $0x28] sm:$0xf]
      %v194 = vld [vmem:[%s1 + $0x2c] sm:$0xf]
      %v195 = vld [vmem:[%s1 + $0x30] sm:$0xf]
      %v196 = vld [vmem:[%s1 + $0x34] sm:$0xf]
      %v197 = vld [vmem:[%s1 + $0x38] sm:$0xf]
      %v198 = vld [vmem:[%s1 + $0x3c] sm:$0xf]
      %v203 = vunpack.c.l.b16 %v179
      %v204 = vunpack.c.l.b16 %v180
      %v205 = vunpack.c.l.b16 %v181
      %v206 = vunpack.c.l.b16 %v182
      %v207 = vpack.c.b16 %v204, %v203
      %v208 = vpack.c.b16 %v206, %v205
      %v227 = vunpack.c.l.b16 %v183
      %v228 = vunpack.c.l.b16 %v184
      %v229 = vunpack.c.l.b16 %v185
      %v230 = vunpack.c.l.b16 %v186
      %v231 = vunpack.c.l.b16 %v187
      %v232 = vunpack.c.l.b16 %v188
      %v233 = vunpack.c.l.b16 %v189
      %v234 = vunpack.c.l.b16 %v190
      %v235 = vunpack.c.l.b16 %v191
      %v236 = vunpack.c.l.b16 %v192
      %v237 = vunpack.c.l.b16 %v193
      %v238 = vunpack.c.l.b16 %v194
      %v239 = vunpack.c.l.b16 %v195
      %v240 = vunpack.c.l.b16 %v196
      %v241 = vunpack.c.l.b16 %v197
      %v242 = vunpack.c.l.b16 %v198
      %v243 = vpack.c.b16 %v228, %v227
      %v244 = vpack.c.b16 %v230, %v229
      %v245 = vpack.c.b16 %v232, %v231
      %v246 = vpack.c.b16 %v234, %v233
      %v247 = vpack.c.b16 %v236, %v235
      %v248 = vpack.c.b16 %v238, %v237
      %v249 = vpack.c.b16 %v240, %v239
      %v250 = vpack.c.b16 %v242, %v241
      %259 = vmatprep.subr.bf16.mxu0 0
      %260 = vmatpush1.bf16.msra.mxu0 %v243
      %261 = vmatprep.subr.bf16.mxu0 0
      %262 = vmatpush1.bf16.msra.mxu0 %v244
      %263 = vmatprep.subr.bf16.mxu0 0
      %264 = vmatpush1.bf16.msra.mxu0 %v245
      %265 = vmatprep.subr.bf16.mxu0 0
      %266 = vmatpush1.bf16.msra.mxu0 %v246
      %267 = vmatprep.subr.bf16.mxu0 0
      %268 = vmatpush1.bf16.msra.mxu0 %v247
      %269 = vmatprep.subr.bf16.mxu0 0
      %270 = vmatpush1.bf16.msra.mxu0 %v248
      %271 = vmatprep.subr.bf16.mxu0 0
      %272 = vmatpush1.bf16.msra.mxu0 %v249
      %273 = vmatprep.subr.bf16.mxu0 0
      %274 = vmatpush1.bf16.msra.mxu0 %v250
      %275 = vmatprep.subr.bf16.mxu0 0
      %276 = vmatpush1.bf16.msra.mxu0 0
      %277 = vmatprep.subr.bf16.mxu0 0
      %278 = vmatpush1.bf16.msra.mxu0 0
      %279 = vmatprep.subr.bf16.mxu0 0
      %280 = vmatpush1.bf16.msra.mxu0 0
      %281 = vmatprep.subr.bf16.mxu0 0
      %282 = vmatpush1.bf16.msra.mxu0 0
      %283 = vmatprep.subr.bf16.mxu0 0
      %284 = vmatpush1.bf16.msra.mxu0 0
      %285 = vmatprep.subr.bf16.mxu0 0
      %286 = vmatpush1.bf16.msra.mxu0 0
      %287 = vmatprep.subr.bf16.mxu0 0
      %288 = vmatpush1.bf16.msra.mxu0 0
      %289 = vmatprep.subr.bf16.mxu0 0
      %290 = vmatpush1.bf16.msra.mxu0 0
      %291 = vmatprep.mubr.bf16.mxu0 0
      %292 = vmatmul.mubr.bf16.gmra.mrb[0].mxu0 %v207
      %v293 = vpop.f32.mrb[0].mxu0
      %v294 = vadd.f32 %v175, %v293
      %v295 = vpop.f32.mrb[0].mxu0
      %v296 = vpop.f32.mrb[0].mxu0
      %v297 = vadd.f32 %v176, %v296
      %v298 = vpop.f32.mrb[0].mxu0
      %299 = vmatprep.mubr.bf16.mxu0 0
      %300 = vmatmul.mubr.bf16.gmra.mrb[0].mxu0 %v208
      %v301 = vpop.f32.mrb[0].mxu0
      %v302 = vadd.f32 %v177, %v301
      %v303 = vpop.f32.mrb[0].mxu0
      %v304 = vpop.f32.mrb[0].mxu0
      %v305 = vadd.f32 %v178, %v304
      %v306 = vpop.f32.mrb[0].mxu0
      %307 = vdwg.mxu0
      %308 = vst [vmem:[%s172] sm:$0xff] %v294
      %309 = vst [vmem:[%s172 + $0x8] sm:$0xff] %v297
      %310 = vst [vmem:[%s172 + $0x10] sm:$0xff] %v302
      %311 = vst [vmem:[%s172 + $0x18] sm:$0xff] %v305
      %s312 = smul.u32 4, %s14
      %p313 = scmp.lt.s32.totalorder %s312, 7
      %s314 = scalar_select %p313, %s312, 7
      %s315 = smul.addr %s314, 8
      %s316 = scalar_lea.vmem %s3, %s315
      // Predicated region
      $region33: #{patch_embedding_forward.1} parent=31 // pred_check
        %p317 = pneg %p100
      $region34: #{patch_embedding_forward.1} parent=31 // pred_check_branch
        %319 = sbr.rel (%p317) target = $region36
      $region35: #{patch_embedding_forward.1} parent=31 // pred_region
        %s320 = smul.u32 4, %s14
      $region36: #{patch_embedding_forward.1} parent=31 // pred_fallthru
        _
    $region32: #{patch_embedding_forward.1} parent=5 // pred_fallthru
      _
    %p321 = scmp.le.s32.totalorder 2, %s9
    // Predicated region
    $region37: #{patch_embedding_forward.1} parent=5 // pred_check
      %p322 = pneg %p321
    $region38: #{patch_embedding_forward.1} parent=5 // pred_check_branch
      %324 = sbr.rel (%p322) target = $region40
    $region39: #{patch_embedding_forward.1} parent=5 // pred_region
      %s325 = ssub.s32 %s9, 2
      // Predicated region
      $region41: #{patch_embedding_forward.1} parent=39 // pred_check
        %p326 = pneg %p106
      $region42: #{patch_embedding_forward.1} parent=39 // pred_check_branch
        %328 = sbr.rel (%p326) target = $region44
      $region43: #{patch_embedding_forward.1} parent=39 // pred_region
        %s329 = smul.u32 4, %s15
        %p330 = scmp.lt.s32.totalorder %s329, 7
        %s331 = scalar_select %p330, %s329, 7
        %s332 = smul.addr %s331, 8
        %s333 = scalar_lea.vmem %s3, %s332
      $region44: #{patch_embedding_forward.1} parent=39 // pred_fallthru
        _
    $region40: #{patch_embedding_forward.1} parent=5 // pred_fallthru
      _
  $region6: #{patch_embedding_forward.1} parent=0 // loop_footer
    %s13 = sadd.s32 1, %s9
  $region7: #{patch_embedding_forward.1} parent=0 // loop_footer_branch
    %8 = sbr.rel target = $region3
  $region8: #{patch_embedding_forward.1} parent=0 // loop_exit
    _

</llo_original>
